<compile_context>
chip_gen: v7x
topology: tpu7x:2x2x1
jax: 0.10.0
libtpu: 0.0.40
codegen_flags: <defaults>
</compile_context>

<pallas_src>
import jax
import jax.numpy as jnp
from jax.experimental import pallas as pl
from jax.experimental.pallas import tpu as pltpu


def _swish_kernel(x_ref, o_ref):
    # Upcast to f32 (PyTorch computes half-precision SiLU in f32 opmath).
    x = x_ref[...].astype(jnp.float32)
    # y = x * sigmoid(x).  exp goes to the EUP (its own VLIW slot), so the
    # math hides entirely under the HBM DMA.
    o_ref[...] = (x * jax.nn.sigmoid(x)).astype(o_ref.dtype)


# Sublane packing multiple per element size (f32 -> 8, bf16/f16 -> 16, int8/fp8 -> 32).
_SUBLANE = {4: 8, 2: 16, 1: 32}


def swish(x: jax.Array, *, target_block_bytes: int = 8 << 20,
          donate_input: bool = False) -> jax.Array:
    """Elementwise Swish / SiLU: x * sigmoid(x), any shape, float dtype."""
    orig_shape = x.shape
    orig_dtype = x.dtype
    n = x.size
    if n == 0:
        return x
    itemsize = x.dtype.itemsize

    # Widest lane-dense column count that divides n exactly (zero padding).
    cols = 0
    for c in (1024, 512, 256, 128):
        if n % c == 0:
            cols = c
            break
    if cols == 0:
        # Ragged size: a fused jnp elementwise op is already exactly one HBM
        # read + one write (optimal for a memory-bound op) and avoids the
        # pad + slice extra passes the previous version paid on this path.
        xf = x.astype(jnp.float32)
        return (xf * jax.nn.sigmoid(xf)).astype(orig_dtype)

    rows = n // cols
    x2d = x.reshape(rows, cols)

    sub = _SUBLANE.get(itemsize, 8)

    # Block sizing: aim for target_block_bytes per block (clamped so
    # 4 buffers + headroom stays under the 56 MiB vmem ceiling), rounded to
    # the sublane packing multiple.
    tbb = max(min(target_block_bytes, 12 << 20), sub * cols * itemsize)
    tile_rows = max(sub, (tbb // (cols * itemsize)) // sub * sub)

    total_bytes = n * itemsize
    if total_bytes > (512 << 10):
        # Never a single grid step for non-tiny arrays: >= 4 pipeline steps so
        # DMA-in / compute / DMA-out overlap and both v7x TensorCores get work.
        quarter = pl.cdiv(rows, 4)
        max_tile_rows = max(sub, pl.cdiv(quarter, sub) * sub)
        tile_rows = min(tile_rows, max_tile_rows)
    if tile_rows >= rows:
        tile_rows = rows  # full-extent block is always layout-legal

    grid = (pl.cdiv(rows, tile_rows),)  # partial last block handled by Pallas

    # (in block + out block) x 2 buffers + headroom; ceiling 56 MiB keeps us
    # inside v7x's 64 MiB-per-TC physical VMEM.
    block_bytes = tile_rows * cols * itemsize
    vmem_limit = int(min(max(4 * block_bytes + (8 << 20), 16 << 20), 56 << 20))

    out2d = pl.pallas_call(
        _swish_kernel,
        out_shape=jax.ShapeDtypeStruct((rows, cols), orig_dtype),
        grid_spec=pltpu.PrefetchScalarGridSpec(
            num_scalar_prefetch=0,
            grid=grid,
            in_specs=[pl.BlockSpec((tile_rows, cols), lambda i: (i, 0))],
            out_specs=pl.BlockSpec((tile_rows, cols), lambda i: (i, 0)),
        ),
        compiler_params=pltpu.CompilerParams(
            dimension_semantics=("parallel",),
            vmem_limit_bytes=vmem_limit,
        ),
        input_output_aliases=({0: 0} if donate_input else {}),
    )(x2d)

    return out2d.reshape(orig_shape)


if __name__ == "__main__":
    key = jax.random.PRNGKey(0)

    # Small NCHW input consistent with typical conv-net usage of Swish.
    x = jax.random.normal(key, (2, 4, 16, 16), dtype=jnp.float32)
    y = jax.block_until_ready(swish(x))
    y_ref = x * jax.nn.sigmoid(x)
    assert y.shape == x.shape and y.dtype == x.dtype
    assert jnp.allclose(y, y_ref, atol=1e-6, rtol=1e-6)

    # Exercise the multi-block (grid > 1) path on a ~1 MiB activation.
    x2 = jax.random.normal(jax.random.PRNGKey(0), (2, 64, 32, 64), dtype=jnp.float32)
    y2 = jax.block_until_ready(swish(x2))
    y2_ref = x2 * jax.nn.sigmoid(x2)
    assert jnp.allclose(y2, y2_ref, atol=1e-6, rtol=1e-6)

    print("KERNEL_OK")
</pallas_src>

<mosaic_0001>
module attributes {stable_mosaic.version = 11 : i64} {
  func.func @_swish_kernel(%arg0: i32, %arg1: memref<2x1024xf32, #tpu.memory_space<vmem>>, %arg2: memref<2x1024xf32, #tpu.memory_space<vmem>>) attributes {dimension_semantics = [#tpu.dimension_semantics<parallel>], iteration_bounds = array<i64: 1>, scalar_prefetch = 0 : i64, scratch_operands = 0 : i64, tpu.core_type = #tpu.core_type<tc>, window_params = [{transform_indices = @transform_0, window_bounds = array<i64: 2, 1024>}, {transform_indices = @transform_1, window_bounds = array<i64: 2, 1024>}]} {
    %c0 = arith.constant 0 : index
    %c0_0 = arith.constant 0 : index
    %0 = vector.load %arg1[%c0, %c0_0] : memref<2x1024xf32, #tpu.memory_space<vmem>>, vector<2x1024xf32>
    %1 = arith.negf %0 : vector<2x1024xf32>
    %2 = math.exp %1 : vector<2x1024xf32>
    %cst = arith.constant 1.000000e+00 : f32
    %3 = vector.broadcast %cst : f32 to vector<2x1024xf32>
    %4 = arith.addf %3, %2 : vector<2x1024xf32>
    %5 = arith.divf %3, %4 : vector<2x1024xf32>
    %6 = arith.mulf %0, %5 : vector<2x1024xf32>
    %c0_1 = arith.constant 0 : index
    %c0_2 = arith.constant 0 : index
    %7 = vector.load %arg2[%c0_1, %c0_2] : memref<2x1024xf32, #tpu.memory_space<vmem>>, vector<2x1024xf32>
    tpu.vector_store %arg2[%c0_1, %c0_2], %6 {strides = array<i32>} : memref<2x1024xf32, #tpu.memory_space<vmem>>, vector<2x1024xf32>,
    return
  }
  func.func @transform_0(%arg0: i32) -> (i32, i32) {
    %c0_i32 = arith.constant 0 : i32
    %c0_i32_0 = arith.constant 0 : i32
    return %arg0, %c0_i32 : i32, i32
  }
  func.func @transform_1(%arg0: i32) -> (i32, i32) {
    %c0_i32 = arith.constant 0 : i32
    %c0_i32_0 = arith.constant 0 : i32
    return %arg0, %c0_i32 : i32, i32
  }
}

</mosaic_0001>

<llo_original>
// kernel: tpu_custom_call.1
$region0: #{tpu_custom_call.1}
  #allocation0 [shape = 'u32[]', space=smem, size = 0x4, offset = 0x4, fixed_abs, tag = 'smem constant byte address 0x4 - core index']
  #allocation1 [shape = 'u32[144,128]{1,0:T(1,128)}', space=vmem, size = 0x12000, scoped, tag = 'internal scratch']
  %s0 = inlined_call_operand.hbm [shape: f32[2,1024], index: 0, kind: input, shape index: {}]
  %s1 = inlined_call_operand.hbm [shape: f32[2,1024], index: 1, kind: output, shape index: {}]
  %s2 = sld [smem:[#allocation0]]
  $region18: #{tpu_custom_call.1} parent=0
    _
  %s4 = ssub.s32 1, %s2
  %s5 = scalar_select 0, %s4, %s2
  $region1: #{tpu_custom_call.1} parent=0
    #allocation2 [shape = 'u8[8192]{0}', space=vmem, size = 0x2000, scoped, tag = 'input window, operand 0, single buffered']
    #allocation3 [shape = 's32[1]{0}', space=sflag, size = 0x4, scoped, tag = 'scoped memory for tpu_custom_call.1']
    #allocation4 [shape = 's32[1]{0}', space=sflag, size = 0x4, scoped, tag = 'scoped memory for tpu_custom_call.1']
    #allocation5 [shape = 'u8[8192]{0}', space=vmem, size = 0x2000, scoped, tag = 'output window, operand 0, single buffered']
    %6 = vsyncpa [#allocation3], 0
    %7 = vsyncpa [#allocation4], 0
    // Predicated region
    $region2: #{tpu_custom_call.1} parent=1 // pred_check
      _
    $region3: #{tpu_custom_call.1} parent=1 // pred_check_branch
      %9 = sbr.rel (0) target = $region5
    $region4: #{tpu_custom_call.1} parent=1 // pred_region
      %s11 = ssub.s32 256, 256
      %12 = vsyncadd [#allocation3], %s11
      %s14 = sshll.u32 [#allocation2], 4
      %s15 = int_to_ptr.vmem [resolvable:$true] %s14
      %17 = dma.hbm_to_vmem [thread:$0]  %s0, 256, %s15, [#allocation3]
    $region5: #{tpu_custom_call.1} parent=1 // pred_fallthru
      _
    // Predicated region
    $region6: #{tpu_custom_call.1} parent=1 // pred_check
      _
    $region7: #{tpu_custom_call.1} parent=1 // pred_check_branch
      %19 = sbr.rel (0) target = $region9
    $region8: #{tpu_custom_call.1} parent=1 // pred_region
      %20 = dma.done [#allocation3], 256
    $region9: #{tpu_custom_call.1} parent=1 // pred_fallthru
      _
    %v21 = vld [vmem:[#allocation2] sm:$0xff]
    %v22 = vld [vmem:[#allocation2 + $0x8] sm:$0xff]
    %v23 = vxor.u32 %v21, 2147483648
    %v24 = vxor.u32 %v22, 2147483648
    %v25 = vmul.f32 %v23, 1.442695
    %v26 = vpow.pop %v25
    %v27 = vmul.f32 %v24, 1.442695
    %v28 = vpow.pop %v27
    %v29 = vadd.f32 %v26, 1.0
    %v30 = vadd.f32 %v28, 1.0
    %v31 = vrcp.pop %v29
    %v32 = vmul.f32 1.0, %v31
    %v33 = vrcp.pop %v30
    %v34 = vmul.f32 1.0, %v33
    %v35 = vmul.f32 %v21, %v32
    %v36 = vmul.f32 %v22, %v34
    %37 = vst [vmem:[#allocation5] sm:$0xff] %v35
    %38 = vst [vmem:[#allocation5 + $0x8] sm:$0xff] %v36
    // Predicated region
    $region10: #{tpu_custom_call.1} parent=1 // pred_check
      _
    $region11: #{tpu_custom_call.1} parent=1 // pred_check_branch
      %40 = sbr.rel (0) target = $region13
    $region12: #{tpu_custom_call.1} parent=1 // pred_region
      %s42 = ssub.s32 256, 256
      %43 = vsyncadd [#allocation4], %s42
      %s45 = sshll.u32 [#allocation5], 4
      %s46 = int_to_ptr.vmem [resolvable:$true] %s45
      %48 = dma.vmem_to_hbm [thread:$0]  %s46, 256, %s1, [#allocation4]
    $region13: #{tpu_custom_call.1} parent=1 // pred_fallthru
      _
    // Predicated region
    $region14: #{tpu_custom_call.1} parent=1 // pred_check
      _
    $region15: #{tpu_custom_call.1} parent=1 // pred_check_branch
      %50 = sbr.rel (0) target = $region17
    $region16: #{tpu_custom_call.1} parent=1 // pred_region
      %51 = dma.done [#allocation4], 256
    $region17: #{tpu_custom_call.1} parent=1 // pred_fallthru
      _
    %52 = vsyncpa [#allocation3], 1
    %53 = vsyncpa [#allocation4], 1

</llo_original>
